<compile_context>
chip_gen: v7x
topology: tpu7x:2x2x1
jax: 0.10.0
libtpu: 0.0.40
codegen_flags: <defaults>
</compile_context>

<pallas_src>
import numpy as np
import jax
import jax.numpy as jnp
from jax.experimental import pallas as pl
from jax.experimental.pallas import tpu as pltpu

_BLK = 16      # SpectralRule's fixed 16x16 diagonal block size
_LANE = 128    # TPU lane width


# ----------------------------------------------------------------------------
# Host-side graph preprocessing (numpy "glue", mirrors SpectralRule.__init__ +
# the RCM / block-diagonal machinery in SpectralRule.forward).
# ----------------------------------------------------------------------------
def _rcm_order(adj_bool):
    """Deterministic Reverse Cuthill-McKee-style ordering (BFS by degree)."""
    n = adj_bool.shape[0]
    degree = adj_bool.sum(axis=1)
    visited = np.zeros(n, dtype=bool)
    order = []
    while len(order) < n:
        cand = np.where(~visited)[0]
        start = cand[np.argmin(degree[cand])]
        visited[start] = True
        queue = [start]
        while queue:
            u = queue.pop(0)
            order.append(u)
            nbrs = np.where(adj_bool[u] & ~visited)[0]
            nbrs = nbrs[np.argsort(degree[nbrs], kind="stable")]
            for v in nbrs:
                visited[v] = True
                queue.append(v)
    return np.array(order[::-1], dtype=np.int64)


def preprocess_graph(A_np, blk_size=_BLK):
    """Returns (p, blocks):
         p       (N,)            RCM permutation (row i of permuted space = node p[i])
         blocks  (N/16, 16, 16)  diagonal 16x16 blocks of P A_hat P^T (float64)
       The dense effective matrix is M_eff = P^T blockdiag(blocks) P.
    """
    N = A_np.shape[0]
    # TODO(synk): remainder (non multiple-of-16) blocks not supported.
    assert N % blk_size == 0, "N must be a multiple of 16"
    A_hat = A_np.astype(np.float64) + np.eye(N, dtype=np.float64)
    d = np.power(A_hat.sum(axis=0), -0.5)
    A_hat = (d[:, None] * A_hat) * d[None, :]          # D^-1/2 (A+I) D^-1/2
    p = _rcm_order(A_hat != 0.0)
    A_plus = A_hat[np.ix_(p, p)]                        # P @ A_hat @ P^T
    nb = N // blk_size
    blocks = np.stack(
        [A_plus[i * blk_size:(i + 1) * blk_size, i * blk_size:(i + 1) * blk_size]
         for i in range(nb)], axis=0)
    return p, blocks


# ----------------------------------------------------------------------------
# Fused Pallas kernel: 3 x tanh( blockdiag(B) @ (h @ W^T) + b ), h stays on-chip.
# ----------------------------------------------------------------------------
def _make_kernel(layer_meta, n_blk, tm, mm_dtype):
    """layer_meta: tuple of (w_row, fin, fout, b_row) static slab offsets."""

    def kernel(blk_ref, x_ref, par_ref, o_ref):
        blocks = blk_ref[...]                 # (n_blk, 16, 16) in mm_dtype
        slab = par_ref[...]                   # (R, 128) f32 - ALL weights+biases, 1 DMA
        h = x_ref[...]                        # (tm, F0) f32
        for (rw, fin, fout, rb) in layer_meta:           # static -> fully unrolled
            wt = slab[rw:rw + fin, :fout].astype(mm_dtype)   # (fin, fout), pre-transposed
            bias = slab[rb:rb + 1, :fout]                    # (1, fout) f32
            # Reassociated: M @ (h @ W^T) + b == (M @ h) @ W^T + b.
            hw = jnp.dot(h.astype(mm_dtype), wt,
                         preferred_element_type=jnp.float32)         # (tm, fout)
            # Block-diagonal aggregation: each 16-row node block only mixes with itself.
            agg = jnp.einsum(
                "bij,bjf->bif", blocks,
                hw.reshape(n_blk, _BLK, fout).astype(mm_dtype),
                preferred_element_type=jnp.float32)                  # (n_blk, 16, fout)
            h = jnp.tanh(agg.reshape(tm, fout) + bias)               # f32 VPU/EUP
        o_ref[...] = h.astype(o_ref.dtype)

    return kernel


def feature_model(perm, blocks, X, params, *, row_tile=128,
                  matmul_dtype=jnp.bfloat16):
    """FeatureModel.forward: all three SpectralRule layers in one pallas_call.

    perm   (N,)           : RCM permutation from preprocess_graph
    blocks (N/16, 16, 16) : diagonal blocks of P A_hat P^T
    X      (N, F0) f32    : node features (original node order)
    params                : list of 3 (W (Fout,Fin), b (Fout,)) pairs
    """
    assert len(params) == 3, "fused kernel is specialized to 3 layers"
    N, F0 = X.shape
    assert N % _BLK == 0

    # --- row tile: largest multiple of 16 <= row_tile that divides N.
    tm = max(_BLK, min(int(row_tile), N))
    tm -= tm % _BLK
    while N % tm:
        tm -= _BLK
    n_blk = tm // _BLK
    grid = (N // tm,)

    # --- pack ALL weights + biases into ONE (8,128)-aligned f32 slab.
    fouts = [int(np.asarray(W).shape[0]) for (W, _) in params]
    cols = max(_LANE, -(-max(fouts) // _LANE) * _LANE)   # lane-dense padded width
    rows_list, layer_meta, r = [], [], 0
    for (W, b) in params:
        Wn = np.asarray(W, np.float32)
        bn = np.asarray(b, np.float32).reshape(-1)
        fout, fin = Wn.shape
        chunk = -(-(fin + 1) // 8) * 8                    # 8-row aligned per layer
        buf = np.zeros((chunk, cols), np.float32)
        buf[:fin, :fout] = Wn.T                           # pre-transposed on host
        buf[fin, :fout] = bn
        layer_meta.append((r, fin, fout, r + fin))
        rows_list.append(buf)
        r += chunk
    slab = jnp.asarray(np.concatenate(rows_list, axis=0))
    F_out = fouts[-1]

    # --- fold the RCM permutation out of the kernel (host-side row gathers).
    perm = np.asarray(perm)
    inv_perm = np.argsort(perm)
    X_perm = jnp.take(jnp.asarray(X, jnp.float32), jnp.asarray(perm), axis=0)
    blocks_dev = jnp.asarray(np.asarray(blocks, np.float32), dtype=matmul_dtype)

    kernel = _make_kernel(tuple(layer_meta), n_blk, tm, matmul_dtype)

    # --- explicit VMEM budget sized to the real (double-buffered) footprint.
    blk_itemsize = jnp.dtype(matmul_dtype).itemsize
    block_bytes = (n_blk * _BLK * _BLK * blk_itemsize + tm * F0 * 4
                   + int(slab.size) * 4 + tm * F_out * 4)
    vmem_limit = int(min(max(16 << 20, 4 * block_bytes), 64 << 20))

    # --- advisory cost hint for XLA scheduling around this tiny custom call.
    flops, transc = 0, 0
    fin = F0
    for fout in fouts:
        flops += 2 * N * fin * fout          # h @ W^T
        flops += 2 * N * _BLK * fout         # block-diagonal aggregation
        transc += N * fout                   # tanh
        fin = fout
    bytes_accessed = int(blocks_dev.size) * blk_itemsize + int(X.size) * 4 \
        + int(slab.size) * 4 + N * F_out * 4

    out_perm = pl.pallas_call(
        kernel,
        out_shape=jax.ShapeDtypeStruct((N, F_out), jnp.float32),
        grid=grid,
        in_specs=[
            pl.BlockSpec((n_blk, _BLK, _BLK), lambda i: (i, 0, 0)),   # B blocks
            pl.BlockSpec((tm, F0), lambda i: (i, 0)),                 # permuted features
            pl.BlockSpec(slab.shape, lambda i: (0, 0)),               # weight/bias slab
        ],
        # NOTE: last output dim (2) is tiny -> masked stores, but it is only 256 B here.
        out_specs=pl.BlockSpec((tm, F_out), lambda i: (i, 0)),
        compiler_params=pltpu.CompilerParams(
            dimension_semantics=("parallel",),        # 16-row blocks are independent
            vmem_limit_bytes=vmem_limit,
        ),
        cost_estimate=pl.CostEstimate(
            flops=flops, transcendentals=transc, bytes_accessed=bytes_accessed),
    )(blocks_dev, X_perm, slab)

    # un-permute the output rows back to original node order (host glue).
    return jnp.take(out_perm, jnp.asarray(inv_perm), axis=0)


# ----------------------------------------------------------------------------
# Deterministic parameter / input construction
# ----------------------------------------------------------------------------
def init_params(key, initial_input_size, hidden_layer_config):
    params = []
    fan_in = initial_input_size
    for (fan_out, _act) in hidden_layer_config:
        key, kw, kb = jax.random.split(key, 3)
        std = float(np.sqrt(2.0 / (fan_in + fan_out)))        # xavier_normal_
        W = std * jax.random.normal(kw, (fan_out, fan_in), dtype=jnp.float32)
        bound = float(1.0 / np.sqrt(fan_in))                  # default Linear bias init
        b = jax.random.uniform(kb, (fan_out,), dtype=jnp.float32,
                               minval=-bound, maxval=bound)
        params.append((W, b))
        fan_in = fan_out
    return params


if __name__ == "__main__":
    N = 32                      # graph nodes (2 blocks of 16)
    initial_input_size = 8      # initial node feature dimension
    hidden_layer_config = [(4, "tanh"), (4, "tanh"), (2, "tanh")]

    key = jax.random.PRNGKey(0)
    key, ka, kx = jax.random.split(key, 3)

    # Deterministic symmetric 0/1 adjacency (no self loops).
    A_rand = jax.random.uniform(ka, (N, N))
    A_np = np.array(A_rand < 0.15, dtype=np.float64)
    A_np = np.maximum(A_np, A_np.T)
    np.fill_diagonal(A_np, 0.0)

    perm, blocks = preprocess_graph(A_np)

    X = jax.random.normal(kx, (N, initial_input_size), dtype=jnp.float32)
    params = init_params(key, initial_input_size, hidden_layer_config)

    # numpy reference using the dense effective matrix M_eff = P^T blockdiag(B) P
    # (also validates that folding the permutation out of the kernel is exact).
    P = np.eye(N)[perm]
    B_full = np.zeros((N, N))
    for i in range(N // _BLK):
        B_full[i * _BLK:(i + 1) * _BLK, i * _BLK:(i + 1) * _BLK] = blocks[i]
    M_eff = P.T @ B_full @ P
    h_ref = np.array(X, dtype=np.float64)
    for (W, b) in params:
        y = M_eff @ h_ref                                       # f64 aggregation (torch ref)
        h_ref = np.tanh(y.astype(np.float32) @ np.array(W).T + np.array(b)).astype(np.float64)
    h_ref = h_ref.astype(np.float32)

    # f32 MXU path: tight parity with the reference.
    out_f32 = feature_model(perm, blocks, X, params, matmul_dtype=jnp.float32)
    out_f32 = jax.block_until_ready(out_f32)
    assert out_f32.shape == (N, hidden_layer_config[-1][0])
    np.testing.assert_allclose(np.array(out_f32), h_ref, atol=1e-4, rtol=1e-4)

    # bf16 MXU path (default; the perf choice at real sizes): loose tolerance only
    # bounds MXU-precision drift — the strict parity check is the f32 run above.
    out_bf16 = feature_model(perm, blocks, X, params)           # matmul_dtype=bf16
    out_bf16 = jax.block_until_ready(out_bf16)
    assert out_bf16.shape == (N, hidden_layer_config[-1][0])
    np.testing.assert_allclose(np.array(out_bf16), h_ref, atol=5e-2, rtol=5e-2)

    print("KERNEL_OK")
</pallas_src>

<mosaic_0001>
module attributes {stable_mosaic.version = 11 : i64} {
  func.func @kernel(%arg0: i32, %arg1: memref<2x16x16xf32, #tpu.memory_space<vmem>>, %arg2: memref<32x8xf32, #tpu.memory_space<vmem>>, %arg3: memref<32x128xf32, #tpu.memory_space<vmem>>, %arg4: memref<32x2xf32, #tpu.memory_space<vmem>>) attributes {dimension_semantics = [#tpu.dimension_semantics<parallel>], iteration_bounds = array<i64: 1>, scalar_prefetch = 0 : i64, scratch_operands = 0 : i64, tpu.core_type = #tpu.core_type<tc>, window_params = [{transform_indices = @transform_0, window_bounds = array<i64: 2, 16, 16>}, {transform_indices = @transform_1, window_bounds = array<i64: 32, 8>}, {pipeline_mode = #tpu.pipeline_mode<synchronous>, transform_indices = @transform_2, window_bounds = array<i64: 32, 128>}, {transform_indices = @transform_3, window_bounds = array<i64: 32, 2>}]} {
    %c0 = arith.constant 0 : index
    %c0_0 = arith.constant 0 : index
    %c0_1 = arith.constant 0 : index
    %0 = vector.load %arg1[%c0, %c0_0, %c0_1] : memref<2x16x16xf32, #tpu.memory_space<vmem>>, vector<2x16x16xf32>
    %c0_2 = arith.constant 0 : index
    %c0_3 = arith.constant 0 : index
    %1 = vector.load %arg3[%c0_2, %c0_3] : memref<32x128xf32, #tpu.memory_space<vmem>>, vector<32x128xf32>
    %c0_4 = arith.constant 0 : index
    %c0_5 = arith.constant 0 : index
    %2 = vector.load %arg2[%c0_4, %c0_5] : memref<32x8xf32, #tpu.memory_space<vmem>>, vector<32x8xf32>
    %3 = vector.extract_strided_slice %1 {offsets = [0, 0], sizes = [8, 4], strides = [1, 1]} : vector<32x128xf32> to vector<8x4xf32>
    %4 = vector.extract_strided_slice %1 {offsets = [8, 0], sizes = [1, 4], strides = [1, 1]} : vector<32x128xf32> to vector<1x4xf32>
    %cst = arith.constant dense<0.000000e+00> : vector<32x4xf32>
    %5 = tpu.matmul %2, %3, %cst {dimension_numbers = #tpu.dot_dimension_numbers<[1], [0], [0], [1], [0, 0, 1, 1], [], []>} : vector<32x8xf32>, vector<8x4xf32>, vector<32x4xf32> -> vector<32x4xf32>
    %6 = vector.shape_cast %5 : vector<32x4xf32> to vector<2x16x4xf32>
    "tpu.trace_start"() <{level = 10 : i32, message = "bij,bjf->bif"}> : () -> ()
    %cst_6 = arith.constant dense<0.000000e+00> : vector<2x16x4xf32>
    %7 = tpu.matmul %0, %6, %cst_6 {dimension_numbers = #tpu.dot_dimension_numbers<[2], [1], [1], [2], [0, 0, 0, 1, 1, 2], [0], [0]>} : vector<2x16x16xf32>, vector<2x16x4xf32>, vector<2x16x4xf32> -> vector<2x16x4xf32>
    "tpu.trace_stop"() : () -> ()
    %8 = vector.shape_cast %7 : vector<2x16x4xf32> to vector<32x4xf32>
    %9 = vector.broadcast %4 : vector<1x4xf32> to vector<32x4xf32>
    %10 = arith.addf %8, %9 : vector<32x4xf32>
    %11 = math.tanh %10 : vector<32x4xf32>
    %12 = vector.extract_strided_slice %1 {offsets = [16, 0], sizes = [4, 4], strides = [1, 1]} : vector<32x128xf32> to vector<4x4xf32>
    %13 = vector.extract_strided_slice %1 {offsets = [20, 0], sizes = [1, 4], strides = [1, 1]} : vector<32x128xf32> to vector<1x4xf32>
    %cst_7 = arith.constant dense<0.000000e+00> : vector<32x4xf32>
    %14 = tpu.matmul %11, %12, %cst_7 {dimension_numbers = #tpu.dot_dimension_numbers<[1], [0], [0], [1], [0, 0, 1, 1], [], []>} : vector<32x4xf32>, vector<4x4xf32>, vector<32x4xf32> -> vector<32x4xf32>
    %15 = vector.shape_cast %14 : vector<32x4xf32> to vector<2x16x4xf32>
    "tpu.trace_start"() <{level = 10 : i32, message = "bij,bjf->bif"}> : () -> ()
    %cst_8 = arith.constant dense<0.000000e+00> : vector<2x16x4xf32>
    %16 = tpu.matmul %0, %15, %cst_8 {dimension_numbers = #tpu.dot_dimension_numbers<[2], [1], [1], [2], [0, 0, 0, 1, 1, 2], [0], [0]>} : vector<2x16x16xf32>, vector<2x16x4xf32>, vector<2x16x4xf32> -> vector<2x16x4xf32>
    "tpu.trace_stop"() : () -> ()
    %17 = vector.shape_cast %16 : vector<2x16x4xf32> to vector<32x4xf32>
    %18 = vector.broadcast %13 : vector<1x4xf32> to vector<32x4xf32>
    %19 = arith.addf %17, %18 : vector<32x4xf32>
    %20 = math.tanh %19 : vector<32x4xf32>
    %21 = vector.extract_strided_slice %1 {offsets = [24, 0], sizes = [4, 2], strides = [1, 1]} : vector<32x128xf32> to vector<4x2xf32>
    %22 = vector.extract_strided_slice %1 {offsets = [28, 0], sizes = [1, 2], strides = [1, 1]} : vector<32x128xf32> to vector<1x2xf32>
    %cst_9 = arith.constant dense<0.000000e+00> : vector<32x2xf32>
    %23 = tpu.matmul %20, %21, %cst_9 {dimension_numbers = #tpu.dot_dimension_numbers<[1], [0], [0], [1], [0, 0, 1, 1], [], []>} : vector<32x4xf32>, vector<4x2xf32>, vector<32x2xf32> -> vector<32x2xf32>
    %24 = vector.shape_cast %23 : vector<32x2xf32> to vector<2x16x2xf32>
    "tpu.trace_start"() <{level = 10 : i32, message = "bij,bjf->bif"}> : () -> ()
    %cst_10 = arith.constant dense<0.000000e+00> : vector<2x16x2xf32>
    %25 = tpu.matmul %0, %24, %cst_10 {dimension_numbers = #tpu.dot_dimension_numbers<[2], [1], [1], [2], [0, 0, 0, 1, 1, 2], [0], [0]>} : vector<2x16x16xf32>, vector<2x16x2xf32>, vector<2x16x2xf32> -> vector<2x16x2xf32>
    "tpu.trace_stop"() : () -> ()
    %26 = vector.shape_cast %25 : vector<2x16x2xf32> to vector<32x2xf32>
    %27 = vector.broadcast %22 : vector<1x2xf32> to vector<32x2xf32>
    %28 = arith.addf %26, %27 : vector<32x2xf32>
    %29 = math.tanh %28 : vector<32x2xf32>
    %c0_11 = arith.constant 0 : index
    %c0_12 = arith.constant 0 : index
    %30 = vector.load %arg4[%c0_11, %c0_12] : memref<32x2xf32, #tpu.memory_space<vmem>>, vector<32x2xf32>
    tpu.vector_store %arg4[%c0_11, %c0_12], %29 {strides = array<i32>} : memref<32x2xf32, #tpu.memory_space<vmem>>, vector<32x2xf32>,
    return
  }
  func.func @transform_0(%arg0: i32) -> (i32, i32, i32) {
    %c0_i32 = arith.constant 0 : i32
    %c0_i32_0 = arith.constant 0 : i32
    %c0_i32_1 = arith.constant 0 : i32
    return %arg0, %c0_i32, %c0_i32_0 : i32, i32, i32
  }
  func.func @transform_1(%arg0: i32) -> (i32, i32) {
    %c0_i32 = arith.constant 0 : i32
    %c0_i32_0 = arith.constant 0 : i32
    return %arg0, %c0_i32 : i32, i32
  }
  func.func @transform_2(%arg0: i32) -> (i32, i32) {
    %c0_i32 = arith.constant 0 : i32
    %c0_i32_0 = arith.constant 0 : i32
    %c0_i32_1 = arith.constant 0 : i32
    return %c0_i32, %c0_i32_0 : i32, i32
  }
  func.func @transform_3(%arg0: i32) -> (i32, i32) {
    %c0_i32 = arith.constant 0 : i32
    %c0_i32_0 = arith.constant 0 : i32
    return %arg0, %c0_i32 : i32, i32
  }
}

</mosaic_0001>

<llo_original>
// kernel: tpu_custom_call.1
$region0: #{tpu_custom_call.1}
  #allocation0 [shape = 'u32[]', space=smem, size = 0x4, offset = 0x4, fixed_abs, tag = 'smem constant byte address 0x4 - core index']
  #allocation1 [shape = 'u32[144,128]{1,0:T(1,128)}', space=vmem, size = 0x12000, scoped, tag = 'internal scratch']
  %s0 = inlined_call_operand.vmem [shape: f32[2,16,16], index: 0, kind: input, shape index: {}]
  %s1 = inlined_call_operand.vmem [shape: f32[32,8], index: 1, kind: input, shape index: {}]
  %s2 = inlined_call_operand.hbm [shape: f32[32,128], index: 2, kind: input, shape index: {}]
  %s3 = inlined_call_operand.vmem [shape: f32[32,2], index: 3, kind: output, shape index: {}]
  %s4 = sld [smem:[#allocation0]]
  $region26: #{tpu_custom_call.1} parent=0
    _
  %s6 = ssub.s32 1, %s4
  %s7 = scalar_select 0, %s6, %s4
  $region1: #{tpu_custom_call.1} parent=0
    #allocation2 [shape = 'u8[16384]{0}', space=vmem, size = 0x4000, scoped, tag = 'input window, operand 2, single buffered']
    #allocation3 [shape = 's32[1]{0}', space=sflag, size = 0x4, scoped, tag = 'scoped memory for tpu_custom_call.1']
    %8 = vsyncpa [#allocation3], 0
    // Predicated region
    $region2: #{tpu_custom_call.1} parent=1 // pred_check
      _
    $region3: #{tpu_custom_call.1} parent=1 // pred_check_branch
      %10 = sbr.rel (0) target = $region5
    $region4: #{tpu_custom_call.1} parent=1 // pred_region
      _
    $region5: #{tpu_custom_call.1} parent=1 // pred_fallthru
      _
    // Predicated region
    $region6: #{tpu_custom_call.1} parent=1 // pred_check
      _
    $region7: #{tpu_custom_call.1} parent=1 // pred_check_branch
      %12 = sbr.rel (0) target = $region9
    $region8: #{tpu_custom_call.1} parent=1 // pred_region
      _
    $region9: #{tpu_custom_call.1} parent=1 // pred_fallthru
      _
    // Predicated region
    $region10: #{tpu_custom_call.1} parent=1 // pred_check
      _
    $region11: #{tpu_custom_call.1} parent=1 // pred_check_branch
      %14 = sbr.rel (0) target = $region13
    $region12: #{tpu_custom_call.1} parent=1 // pred_region
      %s16 = ssub.s32 512, 512
      %17 = vsyncadd [#allocation3], %s16
      %s18 = sshll.u32 [#allocation2], 4
      %s19 = int_to_ptr.vmem [resolvable:$true] %s18
      %24 = dma.hbm_to_vmem [thread:$0]  %s2, 512, %s19, [#allocation3], 128, 128, 8
    $region13: #{tpu_custom_call.1} parent=1 // pred_fallthru
      _
    // Predicated region
    $region14: #{tpu_custom_call.1} parent=1 // pred_check
      _
    $region15: #{tpu_custom_call.1} parent=1 // pred_check_branch
      %26 = sbr.rel (0) target = $region17
    $region16: #{tpu_custom_call.1} parent=1 // pred_region
      %27 = dma.done [#allocation3], 512
    $region17: #{tpu_custom_call.1} parent=1 // pred_fallthru
      _
    %v28 = vld [vmem:[%s0] sm:$0xff]
    %v29 = vld [vmem:[%s0 + $0x8] sm:$0xff]
    %v30 = vld [vmem:[%s0 + $0x10] sm:$0xff]
    %v31 = vld [vmem:[%s0 + $0x18] sm:$0xff]
    %v32 = vld [vmem:[#allocation2] sm:$0xff]
    %v33 = vld [vmem:[#allocation2 + $0x8] sm:$0xff]
    %v34 = vld [vmem:[#allocation2 + $0x10] sm:$0xff]
    %v35 = vld [vmem:[#allocation2 + $0x18] sm:$0xff]
    %v36 = vld [vmem:[%s1] sm:$0xff]
    %v37 = vld [vmem:[%s1 + $0x8] sm:$0xff]
    %v38 = vld [vmem:[%s1 + $0x10] sm:$0xff]
    %v39 = vld [vmem:[%s1 + $0x18] sm:$0xff]
    %vm40 = vcmask 64512
    %v42 = vsel %vm40, %v36, 0
    %v45 = vsel %vm40, %v37, 0
    %v48 = vsel %vm40, %v38, 0
    %v51 = vsel %vm40, %v39, 0
    %53 = vmatprep.subr.mxu0 0.0
    %54 = vmatpush1.msra.mxu0 %v32
    %55 = vmatprep.subr.mxu0 0.0
    %56 = vmatpush1.msra.mxu0 0.0
    %57 = vmatprep.subr.mxu0 0.0
    %58 = vmatpush1.msra.mxu0 0.0
    %59 = vmatprep.subr.mxu0 0.0
    %60 = vmatpush1.msra.mxu0 0.0
    %61 = vmatprep.subr.mxu0 0.0
    %62 = vmatpush1.msra.mxu0 0.0
    %63 = vmatprep.subr.mxu0 0.0
    %64 = vmatpush1.msra.mxu0 0.0
    %65 = vmatprep.subr.mxu0 0.0
    %66 = vmatpush1.msra.mxu0 0.0
    %67 = vmatprep.subr.mxu0 0.0
    %68 = vmatpush1.msra.mxu0 0.0
    %69 = vmatprep.subr.mxu0 0.0
    %70 = vmatpush1.msra.mxu0 0.0
    %71 = vmatprep.subr.mxu0 0.0
    %72 = vmatpush1.msra.mxu0 0.0
    %73 = vmatprep.subr.mxu0 0.0
    %74 = vmatpush1.msra.mxu0 0.0
    %75 = vmatprep.subr.mxu0 0.0
    %76 = vmatpush1.msra.mxu0 0.0
    %77 = vmatprep.subr.mxu0 0.0
    %78 = vmatpush1.msra.mxu0 0.0
    %79 = vmatprep.subr.mxu0 0.0
    %80 = vmatpush1.msra.mxu0 0.0
    %81 = vmatprep.subr.mxu0 0.0
    %82 = vmatpush1.msra.mxu0 0.0
    %83 = vmatprep.subr.mxu0 0.0
    %84 = vmatpush1.msra.mxu0 0.0
    %85 = vmatprep.subr.mxu0 0.0
    %86 = vmatpush1.msra.mxu0 0.0
    %87 = vmatprep.subr.mxu0 0.0
    %88 = vmatpush1.msra.mxu0 0.0
    %89 = vmatprep.subr.mxu0 0.0
    %90 = vmatpush1.msra.mxu0 0.0
    %91 = vmatprep.subr.mxu0 0.0
    %92 = vmatpush1.msra.mxu0 0.0
    %93 = vmatprep.subr.mxu0 0.0
    %94 = vmatpush1.msra.mxu0 0.0
    %95 = vmatprep.subr.mxu0 0.0
    %96 = vmatpush1.msra.mxu0 0.0
    %97 = vmatprep.subr.mxu0 0.0
    %98 = vmatpush1.msra.mxu0 0.0
    %99 = vmatprep.subr.mxu0 0.0
    %100 = vmatpush1.msra.mxu0 0.0
    %101 = vmatprep.subr.mxu0 0.0
    %102 = vmatpush1.msra.mxu0 0.0
    %103 = vmatprep.subr.mxu0 0.0
    %104 = vmatpush1.msra.mxu0 0.0
    %105 = vmatprep.subr.mxu0 0.0
    %106 = vmatpush1.msra.mxu0 0.0
    %107 = vmatprep.subr.mxu0 0.0
    %108 = vmatpush1.msra.mxu0 0.0
    %109 = vmatprep.subr.mxu0 0.0
    %110 = vmatpush1.msra.mxu0 0.0
    %111 = vmatprep.subr.mxu0 0.0
    %112 = vmatpush1.msra.mxu0 0.0
    %113 = vmatprep.subr.mxu0 0.0
    %114 = vmatpush1.msra.mxu0 0.0
    %115 = vmatprep.subr.mxu0 0.0
    %116 = vmatpush1.msra.mxu0 0.0
    %117 = vmatprep.mubr.f32.mxu0 0.0
    %118 = vmatmul.mubr.f32.gmra.mrb[0].mxu0 %v42
    %v119 = vpop.f32.mrb[0].mxu0
    %v120 = vadd.f32 0.0, %v119
    %v121 = vpop.f32.mrb[0].mxu0
    %122 = vmatprep.mubr.f32.mxu0 0.0
    %123 = vmatmul.mubr.f32.gmra.mrb[0].mxu0 %v45
    %v124 = vpop.f32.mrb[0].mxu0
    %v125 = vadd.f32 0.0, %v124
    %v126 = vpop.f32.mrb[0].mxu0
    %127 = vmatprep.mubr.f32.mxu0 0.0
    %128 = vmatmul.mubr.f32.gmra.mrb[0].mxu0 %v48
    %v129 = vpop.f32.mrb[0].mxu0
    %v130 = vadd.f32 0.0, %v129
    %v131 = vpop.f32.mrb[0].mxu0
    %132 = vmatprep.mubr.f32.mxu0 0.0
    %133 = vmatmul.mubr.f32.gmra.mrb[0].mxu0 %v51
    %v134 = vpop.f32.mrb[0].mxu0
    %v135 = vadd.f32 0.0, %v134
    %v136 = vpop.f32.mrb[0].mxu0
    %137 = vdwg.mxu0
    %vm138 = vcmask 130048
    %v140 = vsel %vm138, %v28, 0
    %v143 = vsel %vm138, %v29, 0
    %145 = vmatprep.subr.mxu0 0.0
    %146 = vmatpush1.msra.mxu0 %v120
    %147 = vmatprep.subr.mxu0 0.0
    %148 = vmatpush1.msra.mxu0 %v125
    %149 = vmatprep.subr.mxu0 0.0
    %150 = vmatpush1.msra.mxu0 0.0
    %151 = vmatprep.subr.mxu0 0.0
    %152 = vmatpush1.msra.mxu0 0.0
    %153 = vmatprep.subr.mxu0 0.0
    %154 = vmatpush1.msra.mxu0 0.0
    %155 = vmatprep.subr.mxu0 0.0
    %156 = vmatpush1.msra.mxu0 0.0
    %157 = vmatprep.subr.mxu0 0.0
    %158 = vmatpush1.msra.mxu0 0.0
    %159 = vmatprep.subr.mxu0 0.0
    %160 = vmatpush1.msra.mxu0 0.0
    %161 = vmatprep.subr.mxu0 0.0
    %162 = vmatpush1.msra.mxu0 0.0
    %163 = vmatprep.subr.mxu0 0.0
    %164 = vmatpush1.msra.mxu0 0.0
    %165 = vmatprep.subr.mxu0 0.0
    %166 = vmatpush1.msra.mxu0 0.0
    %167 = vmatprep.subr.mxu0 0.0
    %168 = vmatpush1.msra.mxu0 0.0
    %169 = vmatprep.subr.mxu0 0.0
    %170 = vmatpush1.msra.mxu0 0.0
    %171 = vmatprep.subr.mxu0 0.0
    %172 = vmatpush1.msra.mxu0 0.0
    %173 = vmatprep.subr.mxu0 0.0
    %174 = vmatpush1.msra.mxu0 0.0
    %175 = vmatprep.subr.mxu0 0.0
    %176 = vmatpush1.msra.mxu0 0.0
    %177 = vmatprep.subr.mxu0 0.0
    %178 = vmatpush1.msra.mxu0 0.0
    %179 = vmatprep.subr.mxu0 0.0
    %180 = vmatpush1.msra.mxu0 0.0
    %181 = vmatprep.subr.mxu0 0.0
    %182 = vmatpush1.msra.mxu0 0.0
    %183 = vmatprep.subr.mxu0 0.0
    %184 = vmatpush1.msra.mxu0 0.0
    %185 = vmatprep.subr.mxu0 0.0
    %186 = vmatpush1.msra.mxu0 0.0
    %187 = vmatprep.subr.mxu0 0.0
    %188 = vmatpush1.msra.mxu0 0.0
    %189 = vmatprep.subr.mxu0 0.0
    %190 = vmatpush1.msra.mxu0 0.0
    %191 = vmatprep.subr.mxu0 0.0
    %192 = vmatpush1.msra.mxu0 0.0
    %193 = vmatprep.subr.mxu0 0.0
    %194 = vmatpush1.msra.mxu0 0.0
    %195 = vmatprep.subr.mxu0 0.0
    %196 = vmatpush1.msra.mxu0 0.0
    %197 = vmatprep.subr.mxu0 0.0
    %198 = vmatpush1.msra.mxu0 0.0
    %199 = vmatprep.subr.mxu0 0.0
    %200 = vmatpush1.msra.mxu0 0.0
    %201 = vmatprep.subr.mxu0 0.0
    %202 = vmatpush1.msra.mxu0 0.0
    %203 = vmatprep.subr.mxu0 0.0
    %204 = vmatpush1.msra.mxu0 0.0
    %205 = vmatprep.subr.mxu0 0.0
    %206 = vmatpush1.msra.mxu0 0.0
    %207 = vmatprep.subr.mxu0 0.0
    %208 = vmatpush1.msra.mxu0 0.0
    %209 = vmatprep.mubr.f32.mxu0 0.0
    %210 = vmatmul.mubr.f32.gmra.mrb[0].mxu0 %v140
    %v211 = vpop.f32.mrb[0].mxu0
    %v212 = vadd.f32 0.0, %v211
    %v213 = vpop.f32.mrb[0].mxu0
    %214 = vmatprep.mubr.f32.mxu0 0.0
    %215 = vmatmul.mubr.f32.gmra.mrb[0].mxu0 %v143
    %v216 = vpop.f32.mrb[0].mxu0
    %v217 = vadd.f32 0.0, %v216
    %v218 = vpop.f32.mrb[0].mxu0
    %219 = vdwg.mxu0
    %v221 = vsel %vm138, %v30, 0
    %v224 = vsel %vm138, %v31, 0
    %226 = vmatprep.subr.mxu0 0.0
    %227 = vmatpush1.msra.mxu0 %v130
    %228 = vmatprep.subr.mxu0 0.0
    %229 = vmatpush1.msra.mxu0 %v135
    %230 = vmatprep.subr.mxu0 0.0
    %231 = vmatpush1.msra.mxu0 0.0
    %232 = vmatprep.subr.mxu0 0.0
    %233 = vmatpush1.msra.mxu0 0.0
    %234 = vmatprep.subr.mxu0 0.0
    %235 = vmatpush1.msra.mxu0 0.0
    %236 = vmatprep.subr.mxu0 0.0
    %237 = vmatpush1.msra.mxu0 0.0
    %238 = vmatprep.subr.mxu0 0.0
    %239 = vmatpush1.msra.mxu0 0.0
    %240 = vmatprep.subr.mxu0 0.0
    %241 = vmatpush1.msra.mxu0 0.0
    %242 = vmatprep.subr.mxu0 0.0
    %243 = vmatpush1.msra.mxu0 0.0
    %244 = vmatprep.subr.mxu0 0.0
    %245 = vmatpush1.msra.mxu0 0.0
    %246 = vmatprep.subr.mxu0 0.0
    %247 = vmatpush1.msra.mxu0 0.0
    %248 = vmatprep.subr.mxu0 0.0
    %249 = vmatpush1.msra.mxu0 0.0
    %250 = vmatprep.subr.mxu0 0.0
    %251 = vmatpush1.msra.mxu0 0.0
    %252 = vmatprep.subr.mxu0 0.0
    %253 = vmatpush1.msra.mxu0 0.0
    %254 = vmatprep.subr.mxu0 0.0
    %255 = vmatpush1.msra.mxu0 0.0
    %256 = vmatprep.subr.mxu0 0.0
    %257 = vmatpush1.msra.mxu0 0.0
    %258 = vmatprep.subr.mxu0 0.0
    %259 = vmatpush1.msra.mxu0 0.0
    %260 = vmatprep.subr.mxu0 0.0
    %261 = vmatpush1.msra.mxu0 0.0
    %262 = vmatprep.subr.mxu0 0.0
    %263 = vmatpush1.msra.mxu0 0.0
    %264 = vmatprep.subr.mxu0 0.0
    %265 = vmatpush1.msra.mxu0 0.0
    %266 = vmatprep.subr.mxu0 0.0
    %267 = vmatpush1.msra.mxu0 0.0
    %268 = vmatprep.subr.mxu0 0.0
    %269 = vmatpush1.msra.mxu0 0.0
    %270 = vmatprep.subr.mxu0 0.0
    %271 = vmatpush1.msra.mxu0 0.0
    %272 = vmatprep.subr.mxu0 0.0
    %273 = vmatpush1.msra.mxu0 0.0
    %274 = vmatprep.subr.mxu0 0.0
    %275 = vmatpush1.msra.mxu0 0.0
    %276 = vmatprep.subr.mxu0 0.0
    %277 = vmatpush1.msra.mxu0 0.0
    %278 = vmatprep.subr.mxu0 0.0
    %279 = vmatpush1.msra.mxu0 0.0
    %280 = vmatprep.subr.mxu0 0.0
    %281 = vmatpush1.msra.mxu0 0.0
    %282 = vmatprep.subr.mxu0 0.0
    %283 = vmatpush1.msra.mxu0 0.0
    %284 = vmatprep.subr.mxu0 0.0
    %285 = vmatpush1.msra.mxu0 0.0
    %286 = vmatprep.subr.mxu0 0.0
    %287 = vmatpush1.msra.mxu0 0.0
    %288 = vmatprep.subr.mxu0 0.0
    %289 = vmatpush1.msra.mxu0 0.0
    %290 = vmatprep.mubr.f32.mxu0 0.0
    %291 = vmatmul.mubr.f32.gmra.mrb[0].mxu0 %v221
    %v292 = vpop.f32.mrb[0].mxu0
    %v293 = vadd.f32 0.0, %v292
    %v294 = vpop.f32.mrb[0].mxu0
    %295 = vmatprep.mubr.f32.mxu0 0.0
    %296 = vmatmul.mubr.f32.gmra.mrb[0].mxu0 %v224
    %v297 = vpop.f32.mrb[0].mxu0
    %v298 = vadd.f32 0.0, %v297
    %v299 = vpop.f32.mrb[0].mxu0
    %300 = vdwg.mxu0
    %v301 = vlaneseq
    %v302 = vshrl.u32 %v301, 7
    %v303 = vsub.s32 0, %v302
    %v304 = vrot.slane %v33, %v303
    %v305 = vadd.f32 %v212, %v304
    %v306 = vadd.f32 %v217, %v304
    %v307 = vadd.f32 %v293, %v304
    %v308 = vadd.f32 %v298, %v304
    %v309 = vtanh.pop %v305
    %v310 = vtanh.pop %v306
    %v311 = vtanh.pop %v307
    %v312 = vtanh.pop %v308
    %vm313 = vcmask 31744
    %v315 = vsel %vm313, %v309, 0
    %v318 = vsel %vm313, %v310, 0
    %v321 = vsel %vm313, %v311, 0
    %v324 = vsel %vm313, %v312, 0
    %vm326 = vcmask 1043456
    %v328 = vsel %vm326, %v34, 0
    %330 = vmatprep.subr.mxu0 0.0
    %331 = vmatpush1.msra.mxu0 %v328
    %332 = vmatprep.subr.mxu0 0.0
    %333 = vmatpush1.msra.mxu0 0.0
    %334 = vmatprep.subr.mxu0 0.0
    %335 = vmatpush1.msra.mxu0 0.0
    %336 = vmatprep.subr.mxu0 0.0
    %337 = vmatpush1.msra.mxu0 0.0
    %338 = vmatprep.subr.mxu0 0.0
    %339 = vmatpush1.msra.mxu0 0.0
    %340 = vmatprep.subr.mxu0 0.0
    %341 = vmatpush1.msra.mxu0 0.0
    %342 = vmatprep.subr.mxu0 0.0
    %343 = vmatpush1.msra.mxu0 0.0
    %344 = vmatprep.subr.mxu0 0.0
    %345 = vmatpush1.msra.mxu0 0.0
    %346 = vmatprep.subr.mxu0 0.0
    %347 = vmatpush1.msra.mxu0 0.0
    %348 = vmatprep.subr.mxu0 0.0
    %349 = vmatpush1.msra.mxu0 0.0
    %350 = vmatprep.subr.mxu0 0.0
    %351 = vmatpush1.msra.mxu0 0.0
    %352 = vmatprep.subr.mxu0 0.0
    %353 = vmatpush1.msra.mxu0 0.0
    %354 = vmatprep.subr.mxu0 0.0
    %355 = vmatpush1.msra.mxu0 0.0
    %356 = vmatprep.subr.mxu0 0.0
    %357 = vmatpush1.msra.mxu0 0.0
    %358 = vmatprep.subr.mxu0 0.0
    %359 = vmatpush1.msra.mxu0 0.0
    %360 = vmatprep.subr.mxu0 0.0
    %361 = vmatpush1.msra.mxu0 0.0
    %362 = vmatprep.subr.mxu0 0.0
    %363 = vmatpush1.msra.mxu0 0.0
    %364 = vmatprep.subr.mxu0 0.0
    %365 = vmatpush1.msra.mxu0 0.0
    %366 = vmatprep.subr.mxu0 0.0
    %367 = vmatpush1.msra.mxu0 0.0
    %368 = vmatprep.subr.mxu0 0.0
    %369 = vmatpush1.msra.mxu0 0.0
    %370 = vmatprep.subr.mxu0 0.0
    %371 = vmatpush1.msra.mxu0 0.0
    %372 = vmatprep.subr.mxu0 0.0
    %373 = vmatpush1.msra.mxu0 0.0
    %374 = vmatprep.subr.mxu0 0.0
    %375 = vmatpush1.msra.mxu0 0.0
    %376 = vmatprep.subr.mxu0 0.0
    %377 = vmatpush1.msra.mxu0 0.0
    %378 = vmatprep.subr.mxu0 0.0
    %379 = vmatpush1.msra.mxu0 0.0
    %380 = vmatprep.subr.mxu0 0.0
    %381 = vmatpush1.msra.mxu0 0.0
    %382 = vmatprep.subr.mxu0 0.0
    %383 = vmatpush1.msra.mxu0 0.0
    %384 = vmatprep.subr.mxu0 0.0
    %385 = vmatpush1.msra.mxu0 0.0
    %386 = vmatprep.subr.mxu0 0.0
    %387 = vmatpush1.msra.mxu0 0.0
    %388 = vmatprep.subr.mxu0 0.0
    %389 = vmatpush1.msra.mxu0 0.0
    %390 = vmatprep.subr.mxu0 0.0
    %391 = vmatpush1.msra.mxu0 0.0
    %392 = vmatprep.subr.mxu0 0.0
    %393 = vmatpush1.msra.mxu0 0.0
    %394 = vmatprep.mubr.f32.mxu0 0.0
    %395 = vmatmul.mubr.f32.gmra.mrb[0].mxu0 %v315
    %v396 = vpop.f32.mrb[0].mxu0
    %v397 = vadd.f32 0.0, %v396
    %v398 = vpop.f32.mrb[0].mxu0
    %399 = vmatprep.mubr.f32.mxu0 0.0
    %400 = vmatmul.mubr.f32.gmra.mrb[0].mxu0 %v318
    %v401 = vpop.f32.mrb[0].mxu0
    %v402 = vadd.f32 0.0, %v401
    %v403 = vpop.f32.mrb[0].mxu0
    %404 = vmatprep.mubr.f32.mxu0 0.0
    %405 = vmatmul.mubr.f32.gmra.mrb[0].mxu0 %v321
    %v406 = vpop.f32.mrb[0].mxu0
    %v407 = vadd.f32 0.0, %v406
    %v408 = vpop.f32.mrb[0].mxu0
    %409 = vmatprep.mubr.f32.mxu0 0.0
    %410 = vmatmul.mubr.f32.gmra.mrb[0].mxu0 %v324
    %v411 = vpop.f32.mrb[0].mxu0
    %v412 = vadd.f32 0.0, %v411
    %v413 = vpop.f32.mrb[0].mxu0
    %414 = vdwg.mxu0
    %415 = vmatprep.subr.mxu0 0.0
    %416 = vmatpush1.msra.mxu0 %v397
    %417 = vmatprep.subr.mxu0 0.0
    %418 = vmatpush1.msra.mxu0 %v402
    %419 = vmatprep.subr.mxu0 0.0
    %420 = vmatpush1.msra.mxu0 0.0
    %421 = vmatprep.subr.mxu0 0.0
    %422 = vmatpush1.msra.mxu0 0.0
    %423 = vmatprep.subr.mxu0 0.0
    %424 = vmatpush1.msra.mxu0 0.0
    %425 = vmatprep.subr.mxu0 0.0
    %426 = vmatpush1.msra.mxu0 0.0
    %427 = vmatprep.subr.mxu0 0.0
    %428 = vmatpush1.msra.mxu0 0.0
    %429 = vmatprep.subr.mxu0 0.0
    %430 = vmatpush1.msra.mxu0 0.0
    %431 = vmatprep.subr.mxu0 0.0
    %432 = vmatpush1.msra.mxu0 0.0
    %433 = vmatprep.subr.mxu0 0.0
    %434 = vmatpush1.msra.mxu0 0.0
    %435 = vmatprep.subr.mxu0 0.0
    %436 = vmatpush1.msra.mxu0 0.0
    %437 = vmatprep.subr.mxu0 0.0
    %438 = vmatpush1.msra.mxu0 0.0
    %439 = vmatprep.subr.mxu0 0.0
    %440 = vmatpush1.msra.mxu0 0.0
    %441 = vmatprep.subr.mxu0 0.0
    %442 = vmatpush1.msra.mxu0 0.0
    %443 = vmatprep.subr.mxu0 0.0
    %444 = vmatpush1.msra.mxu0 0.0
    %445 = vmatprep.subr.mxu0 0.0
    %446 = vmatpush1.msra.mxu0 0.0
    %447 = vmatprep.subr.mxu0 0.0
    %448 = vmatpush1.msra.mxu0 0.0
    %449 = vmatprep.subr.mxu0 0.0
    %450 = vmatpush1.msra.mxu0 0.0
    %451 = vmatprep.subr.mxu0 0.0
    %452 = vmatpush1.msra.mxu0 0.0
    %453 = vmatprep.subr.mxu0 0.0
    %454 = vmatpush1.msra.mxu0 0.0
    %455 = vmatprep.subr.mxu0 0.0
    %456 = vmatpush1.msra.mxu0 0.0
    %457 = vmatprep.subr.mxu0 0.0
    %458 = vmatpush1.msra.mxu0 0.0
    %459 = vmatprep.subr.mxu0 0.0
    %460 = vmatpush1.msra.mxu0 0.0
    %461 = vmatprep.subr.mxu0 0.0
    %462 = vmatpush1.msra.mxu0 0.0
    %463 = vmatprep.subr.mxu0 0.0
    %464 = vmatpush1.msra.mxu0 0.0
    %465 = vmatprep.subr.mxu0 0.0
    %466 = vmatpush1.msra.mxu0 0.0
    %467 = vmatprep.subr.mxu0 0.0
    %468 = vmatpush1.msra.mxu0 0.0
    %469 = vmatprep.subr.mxu0 0.0
    %470 = vmatpush1.msra.mxu0 0.0
    %471 = vmatprep.subr.mxu0 0.0
    %472 = vmatpush1.msra.mxu0 0.0
    %473 = vmatprep.subr.mxu0 0.0
    %474 = vmatpush1.msra.mxu0 0.0
    %475 = vmatprep.subr.mxu0 0.0
    %476 = vmatpush1.msra.mxu0 0.0
    %477 = vmatprep.subr.mxu0 0.0
    %478 = vmatpush1.msra.mxu0 0.0
    %479 = vmatprep.mubr.f32.mxu0 0.0
    %480 = vmatmul.mubr.f32.gmra.mrb[0].mxu0 %v140
    %v481 = vpop.f32.mrb[0].mxu0
    %v482 = vadd.f32 0.0, %v481
    %v483 = vpop.f32.mrb[0].mxu0
    %484 = vmatprep.mubr.f32.mxu0 0.0
    %485 = vmatmul.mubr.f32.gmra.mrb[0].mxu0 %v143
    %v486 = vpop.f32.mrb[0].mxu0
    %v487 = vadd.f32 0.0, %v486
    %v488 = vpop.f32.mrb[0].mxu0
    %489 = vdwg.mxu0
    %490 = vmatprep.subr.mxu0 0.0
    %491 = vmatpush1.msra.mxu0 %v407
    %492 = vmatprep.subr.mxu0 0.0
    %493 = vmatpush1.msra.mxu0 %v412
    %494 = vmatprep.subr.mxu0 0.0
    %495 = vmatpush1.msra.mxu0 0.0
    %496 = vmatprep.subr.mxu0 0.0
    %497 = vmatpush1.msra.mxu0 0.0
    %498 = vmatprep.subr.mxu0 0.0
    %499 = vmatpush1.msra.mxu0 0.0
    %500 = vmatprep.subr.mxu0 0.0
    %501 = vmatpush1.msra.mxu0 0.0
    %502 = vmatprep.subr.mxu0 0.0
    %503 = vmatpush1.msra.mxu0 0.0
    %504 = vmatprep.subr.mxu0 0.0
    %505 = vmatpush1.msra.mxu0 0.0
    %506 = vmatprep.subr.mxu0 0.0
    %507 = vmatpush1.msra.mxu0 0.0
    %508 = vmatprep.subr.mxu0 0.0
    %509 = vmatpush1.msra.mxu0 0.0
    %510 = vmatprep.subr.mxu0 0.0
    %511 = vmatpush1.msra.mxu0 0.0
    %512 = vmatprep.subr.mxu0 0.0
    %513 = vmatpush1.msra.mxu0 0.0
    %514 = vmatprep.subr.mxu0 0.0
    %515 = vmatpush1.msra.mxu0 0.0
    %516 = vmatprep.subr.mxu0 0.0
    %517 = vmatpush1.msra.mxu0 0.0
    %518 = vmatprep.subr.mxu0 0.0
    %519 = vmatpush1.msra.mxu0 0.0
    %520 = vmatprep.subr.mxu0 0.0
    %521 = vmatpush1.msra.mxu0 0.0
    %522 = vmatprep.subr.mxu0 0.0
    %523 = vmatpush1.msra.mxu0 0.0
    %524 = vmatprep.subr.mxu0 0.0
    %525 = vmatpush1.msra.mxu0 0.0
    %526 = vmatprep.subr.mxu0 0.0
    %527 = vmatpush1.msra.mxu0 0.0
    %528 = vmatprep.subr.mxu0 0.0
    %529 = vmatpush1.msra.mxu0 0.0
    %530 = vmatprep.subr.mxu0 0.0
    %531 = vmatpush1.msra.mxu0 0.0
    %532 = vmatprep.subr.mxu0 0.0
    %533 = vmatpush1.msra.mxu0 0.0
    %534 = vmatprep.subr.mxu0 0.0
    %535 = vmatpush1.msra.mxu0 0.0
    %536 = vmatprep.subr.mxu0 0.0
    %537 = vmatpush1.msra.mxu0 0.0
    %538 = vmatprep.subr.mxu0 0.0
    %539 = vmatpush1.msra.mxu0 0.0
    %540 = vmatprep.subr.mxu0 0.0
    %541 = vmatpush1.msra.mxu0 0.0
    %542 = vmatprep.subr.mxu0 0.0
    %543 = vmatpush1.msra.mxu0 0.0
    %544 = vmatprep.subr.mxu0 0.0
    %545 = vmatpush1.msra.mxu0 0.0
    %546 = vmatprep.subr.mxu0 0.0
    %547 = vmatpush1.msra.mxu0 0.0
    %548 = vmatprep.subr.mxu0 0.0
    %549 = vmatpush1.msra.mxu0 0.0
    %550 = vmatprep.subr.mxu0 0.0
    %551 = vmatpush1.msra.mxu0 0.0
    %552 = vmatprep.subr.mxu0 0.0
    %553 = vmatpush1.msra.mxu0 0.0
    %554 = vmatprep.mubr.f32.mxu0 0.0
    %555 = vmatmul.mubr.f32.gmra.mrb[0].mxu0 %v221
    %v556 = vpop.f32.mrb[0].mxu0
    %v557 = vadd.f32 0.0, %v556
    %v558 = vpop.f32.mrb[0].mxu0
    %559 = vmatprep.mubr.f32.mxu0 0.0
    %560 = vmatmul.mubr.f32.gmra.mrb[0].mxu0 %v224
    %v561 = vpop.f32.mrb[0].mxu0
    %v562 = vadd.f32 0.0, %v561
    %v563 = vpop.f32.mrb[0].mxu0
    %564 = vdwg.mxu0
    %v565 = vlaneseq
    %v566 = vshrl.u32 %v565, 7
    %v567 = vsub.s32 4, %v566
    %v568 = vrot.slane %v34, %v567
    %v569 = vadd.f32 %v482, %v568
    %v570 = vadd.f32 %v487, %v568
    %v571 = vadd.f32 %v557, %v568
    %v572 = vadd.f32 %v562, %v568
    %v573 = vtanh.pop %v569
    %v574 = vtanh.pop %v570
    %v575 = vtanh.pop %v571
    %v576 = vtanh.pop %v572
    %v578 = vsel %vm313, %v573, 0
    %v581 = vsel %vm313, %v574, 0
    %v584 = vsel %vm313, %v575, 0
    %v587 = vsel %vm313, %v576, 0
    %v590 = vsel %vm326, %v35, 0
    %592 = vmatprep.subr.mxu0 0.0
    %593 = vmatpush1.msra.mxu0 %v590
    %594 = vmatprep.subr.mxu0 0.0
    %595 = vmatpush1.msra.mxu0 0.0
    %596 = vmatprep.subr.mxu0 0.0
    %597 = vmatpush1.msra.mxu0 0.0
    %598 = vmatprep.subr.mxu0 0.0
    %599 = vmatpush1.msra.mxu0 0.0
    %600 = vmatprep.subr.mxu0 0.0
    %601 = vmatpush1.msra.mxu0 0.0
    %602 = vmatprep.subr.mxu0 0.0
    %603 = vmatpush1.msra.mxu0 0.0
    %604 = vmatprep.subr.mxu0 0.0
    %605 = vmatpush1.msra.mxu0 0.0
    %606 = vmatprep.subr.mxu0 0.0
    %607 = vmatpush1.msra.mxu0 0.0
    %608 = vmatprep.subr.mxu0 0.0
    %609 = vmatpush1.msra.mxu0 0.0
    %610 = vmatprep.subr.mxu0 0.0
    %611 = vmatpush1.msra.mxu0 0.0
    %612 = vmatprep.subr.mxu0 0.0
    %613 = vmatpush1.msra.mxu0 0.0
    %614 = vmatprep.subr.mxu0 0.0
    %615 = vmatpush1.msra.mxu0 0.0
    %616 = vmatprep.subr.mxu0 0.0
    %617 = vmatpush1.msra.mxu0 0.0
    %618 = vmatprep.subr.mxu0 0.0
    %619 = vmatpush1.msra.mxu0 0.0
    %620 = vmatprep.subr.mxu0 0.0
    %621 = vmatpush1.msra.mxu0 0.0
    %622 = vmatprep.subr.mxu0 0.0
    %623 = vmatpush1.msra.mxu0 0.0
    %624 = vmatprep.subr.mxu0 0.0
    %625 = vmatpush1.msra.mxu0 0.0
    %626 = vmatprep.subr.mxu0 0.0
    %627 = vmatpush1.msra.mxu0 0.0
    %628 = vmatprep.subr.mxu0 0.0
    %629 = vmatpush1.msra.mxu0 0.0
    %630 = vmatprep.subr.mxu0 0.0
    %631 = vmatpush1.msra.mxu0 0.0
    %632 = vmatprep.subr.mxu0 0.0
    %633 = vmatpush1.msra.mxu0 0.0
    %634 = vmatprep.subr.mxu0 0.0
    %635 = vmatpush1.msra.mxu0 0.0
    %636 = vmatprep.subr.mxu0 0.0
    %637 = vmatpush1.msra.mxu0 0.0
    %638 = vmatprep.subr.mxu0 0.0
    %639 = vmatpush1.msra.mxu0 0.0
    %640 = vmatprep.subr.mxu0 0.0
    %641 = vmatpush1.msra.mxu0 0.0
    %642 = vmatprep.subr.mxu0 0.0
    %643 = vmatpush1.msra.mxu0 0.0
    %644 = vmatprep.subr.mxu0 0.0
    %645 = vmatpush1.msra.mxu0 0.0
    %646 = vmatprep.subr.mxu0 0.0
    %647 = vmatpush1.msra.mxu0 0.0
    %648 = vmatprep.subr.mxu0 0.0
    %649 = vmatpush1.msra.mxu0 0.0
    %650 = vmatprep.subr.mxu0 0.0
    %651 = vmatpush1.msra.mxu0 0.0
    %652 = vmatprep.subr.mxu0 0.0
    %653 = vmatpush1.msra.mxu0 0.0
    %654 = vmatprep.subr.mxu0 0.0
    %655 = vmatpush1.msra.mxu0 0.0
    %656 = vmatprep.mubr.f32.mxu0 0.0
    %657 = vmatmul.mubr.f32.gmra.mrb[0].mxu0 %v578
    %v658 = vpop.f32.mrb[0].mxu0
    %v659 = vadd.f32 0.0, %v658
    %v660 = vpop.f32.mrb[0].mxu0
    %661 = vmatprep.mubr.f32.mxu0 0.0
    %662 = vmatmul.mubr.f32.gmra.mrb[0].mxu0 %v581
    %v663 = vpop.f32.mrb[0].mxu0
    %v664 = vadd.f32 0.0, %v663
    %v665 = vpop.f32.mrb[0].mxu0
    %666 = vmatprep.mubr.f32.mxu0 0.0
    %667 = vmatmul.mubr.f32.gmra.mrb[0].mxu0 %v584
    %v668 = vpop.f32.mrb[0].mxu0
    %v669 = vadd.f32 0.0, %v668
    %v670 = vpop.f32.mrb[0].mxu0
    %671 = vmatprep.mubr.f32.mxu0 0.0
    %672 = vmatmul.mubr.f32.gmra.mrb[0].mxu0 %v587
    %v673 = vpop.f32.mrb[0].mxu0
    %v674 = vadd.f32 0.0, %v673
    %v675 = vpop.f32.mrb[0].mxu0
    %676 = vdwg.mxu0
    %677 = vmatprep.subr.mxu0 0.0
    %678 = vmatpush1.msra.mxu0 %v659
    %679 = vmatprep.subr.mxu0 0.0
    %680 = vmatpush1.msra.mxu0 %v664
    %681 = vmatprep.subr.mxu0 0.0
    %682 = vmatpush1.msra.mxu0 0.0
    %683 = vmatprep.subr.mxu0 0.0
    %684 = vmatpush1.msra.mxu0 0.0
    %685 = vmatprep.subr.mxu0 0.0
    %686 = vmatpush1.msra.mxu0 0.0
    %687 = vmatprep.subr.mxu0 0.0
    %688 = vmatpush1.msra.mxu0 0.0
    %689 = vmatprep.subr.mxu0 0.0
    %690 = vmatpush1.msra.mxu0 0.0
    %691 = vmatprep.subr.mxu0 0.0
    %692 = vmatpush1.msra.mxu0 0.0
    %693 = vmatprep.subr.mxu0 0.0
    %694 = vmatpush1.msra.mxu0 0.0
    %695 = vmatprep.subr.mxu0 0.0
    %696 = vmatpush1.msra.mxu0 0.0
    %697 = vmatprep.subr.mxu0 0.0
    %698 = vmatpush1.msra.mxu0 0.0
    %699 = vmatprep.subr.mxu0 0.0
    %700 = vmatpush1.msra.mxu0 0.0
    %701 = vmatprep.subr.mxu0 0.0
    %702 = vmatpush1.msra.mxu0 0.0
    %703 = vmatprep.subr.mxu0 0.0
    %704 = vmatpush1.msra.mxu0 0.0
    %705 = vmatprep.subr.mxu0 0.0
    %706 = vmatpush1.msra.mxu0 0.0
    %707 = vmatprep.subr.mxu0 0.0
    %708 = vmatpush1.msra.mxu0 0.0
    %709 = vmatprep.subr.mxu0 0.0
    %710 = vmatpush1.msra.mxu0 0.0
    %711 = vmatprep.subr.mxu0 0.0
    %712 = vmatpush1.msra.mxu0 0.0
    %713 = vmatprep.subr.mxu0 0.0
    %714 = vmatpush1.msra.mxu0 0.0
    %715 = vmatprep.subr.mxu0 0.0
    %716 = vmatpush1.msra.mxu0 0.0
    %717 = vmatprep.subr.mxu0 0.0
    %718 = vmatpush1.msra.mxu0 0.0
    %719 = vmatprep.subr.mxu0 0.0
    %720 = vmatpush1.msra.mxu0 0.0
    %721 = vmatprep.subr.mxu0 0.0
    %722 = vmatpush1.msra.mxu0 0.0
    %723 = vmatprep.subr.mxu0 0.0
    %724 = vmatpush1.msra.mxu0 0.0
    %725 = vmatprep.subr.mxu0 0.0
    %726 = vmatpush1.msra.mxu0 0.0
    %727 = vmatprep.subr.mxu0 0.0
    %728 = vmatpush1.msra.mxu0 0.0
    %729 = vmatprep.subr.mxu0 0.0
    %730 = vmatpush1.msra.mxu0 0.0
    %731 = vmatprep.subr.mxu0 0.0
    %732 = vmatpush1.msra.mxu0 0.0
    %733 = vmatprep.subr.mxu0 0.0
    %734 = vmatpush1.msra.mxu0 0.0
    %735 = vmatprep.subr.mxu0 0.0
    %736 = vmatpush1.msra.mxu0 0.0
    %737 = vmatprep.subr.mxu0 0.0
    %738 = vmatpush1.msra.mxu0 0.0
    %739 = vmatprep.subr.mxu0 0.0
    %740 = vmatpush1.msra.mxu0 0.0
    %741 = vmatprep.mubr.f32.mxu0 0.0
    %742 = vmatmul.mubr.f32.gmra.mrb[0].mxu0 %v140
    %v743 = vpop.f32.mrb[0].mxu0
    %v744 = vadd.f32 0.0, %v743
    %v745 = vpop.f32.mrb[0].mxu0
    %746 = vmatprep.mubr.f32.mxu0 0.0
    %747 = vmatmul.mubr.f32.gmra.mrb[0].mxu0 %v143
    %v748 = vpop.f32.mrb[0].mxu0
    %v749 = vadd.f32 0.0, %v748
    %v750 = vpop.f32.mrb[0].mxu0
    %751 = vdwg.mxu0
    %752 = vmatprep.subr.mxu0 0.0
    %753 = vmatpush1.msra.mxu0 %v669
    %754 = vmatprep.subr.mxu0 0.0
    %755 = vmatpush1.msra.mxu0 %v674
    %756 = vmatprep.subr.mxu0 0.0
    %757 = vmatpush1.msra.mxu0 0.0
    %758 = vmatprep.subr.mxu0 0.0
    %759 = vmatpush1.msra.mxu0 0.0
    %760 = vmatprep.subr.mxu0 0.0
    %761 = vmatpush1.msra.mxu0 0.0
    %762 = vmatprep.subr.mxu0 0.0
    %763 = vmatpush1.msra.mxu0 0.0
    %764 = vmatprep.subr.mxu0 0.0
    %765 = vmatpush1.msra.mxu0 0.0
    %766 = vmatprep.subr.mxu0 0.0
    %767 = vmatpush1.msra.mxu0 0.0
    %768 = vmatprep.subr.mxu0 0.0
    %769 = vmatpush1.msra.mxu0 0.0
    %770 = vmatprep.subr.mxu0 0.0
    %771 = vmatpush1.msra.mxu0 0.0
    %772 = vmatprep.subr.mxu0 0.0
    %773 = vmatpush1.msra.mxu0 0.0
    %774 = vmatprep.subr.mxu0 0.0
    %775 = vmatpush1.msra.mxu0 0.0
    %776 = vmatprep.subr.mxu0 0.0
    %777 = vmatpush1.msra.mxu0 0.0
    %778 = vmatprep.subr.mxu0 0.0
    %779 = vmatpush1.msra.mxu0 0.0
    %780 = vmatprep.subr.mxu0 0.0
    %781 = vmatpush1.msra.mxu0 0.0
    %782 = vmatprep.subr.mxu0 0.0
    %783 = vmatpush1.msra.mxu0 0.0
    %784 = vmatprep.subr.mxu0 0.0
    %785 = vmatpush1.msra.mxu0 0.0
    %786 = vmatprep.subr.mxu0 0.0
    %787 = vmatpush1.msra.mxu0 0.0
    %788 = vmatprep.subr.mxu0 0.0
    %789 = vmatpush1.msra.mxu0 0.0
    %790 = vmatprep.subr.mxu0 0.0
    %791 = vmatpush1.msra.mxu0 0.0
    %792 = vmatprep.subr.mxu0 0.0
    %793 = vmatpush1.msra.mxu0 0.0
    %794 = vmatprep.subr.mxu0 0.0
    %795 = vmatpush1.msra.mxu0 0.0
    %796 = vmatprep.subr.mxu0 0.0
    %797 = vmatpush1.msra.mxu0 0.0
    %798 = vmatprep.subr.mxu0 0.0
    %799 = vmatpush1.msra.mxu0 0.0
    %800 = vmatprep.subr.mxu0 0.0
    %801 = vmatpush1.msra.mxu0 0.0
    %802 = vmatprep.subr.mxu0 0.0
    %803 = vmatpush1.msra.mxu0 0.0
    %804 = vmatprep.subr.mxu0 0.0
    %805 = vmatpush1.msra.mxu0 0.0
    %806 = vmatprep.subr.mxu0 0.0
    %807 = vmatpush1.msra.mxu0 0.0
    %808 = vmatprep.subr.mxu0 0.0
    %809 = vmatpush1.msra.mxu0 0.0
    %810 = vmatprep.subr.mxu0 0.0
    %811 = vmatpush1.msra.mxu0 0.0
    %812 = vmatprep.subr.mxu0 0.0
    %813 = vmatpush1.msra.mxu0 0.0
    %814 = vmatprep.subr.mxu0 0.0
    %815 = vmatpush1.msra.mxu0 0.0
    %816 = vmatprep.mubr.f32.mxu0 0.0
    %817 = vmatmul.mubr.f32.gmra.mrb[0].mxu0 %v221
    %v818 = vpop.f32.mrb[0].mxu0
    %v819 = vadd.f32 0.0, %v818
    %v820 = vpop.f32.mrb[0].mxu0
    %821 = vmatprep.mubr.f32.mxu0 0.0
    %822 = vmatmul.mubr.f32.gmra.mrb[0].mxu0 %v224
    %v823 = vpop.f32.mrb[0].mxu0
    %v824 = vadd.f32 0.0, %v823
    %v825 = vpop.f32.mrb[0].mxu0
    %826 = vdwg.mxu0
    %v827 = vlaneseq
    %v828 = vshrl.u32 %v827, 7
    %v829 = vsub.s32 4, %v828
    %v830 = vrot.slane %v35, %v829
    %v831 = vadd.f32 %v744, %v830
    %v832 = vadd.f32 %v749, %v830
    %v833 = vadd.f32 %v819, %v830
    %v834 = vadd.f32 %v824, %v830
    %v835 = vtanh.pop %v831
    %v836 = vtanh.pop %v832
    %v837 = vtanh.pop %v833
    %v838 = vtanh.pop %v834
    %vm839 = vcmask 15360
    %840 = vst.msk [vmem:[%s3] sm:$0xff] %vm839, %v835
    %841 = vst.msk [vmem:[%s3 + $0x8] sm:$0xff] %vm839, %v836
    %842 = vst.msk [vmem:[%s3 + $0x10] sm:$0xff] %vm839, %v837
    %843 = vst.msk [vmem:[%s3 + $0x18] sm:$0xff] %vm839, %v838
    // Predicated region
    $region18: #{tpu_custom_call.1} parent=1 // pred_check
      _
    $region19: #{tpu_custom_call.1} parent=1 // pred_check_branch
      %845 = sbr.rel (0) target = $region21
    $region20: #{tpu_custom_call.1} parent=1 // pred_region
      _
    $region21: #{tpu_custom_call.1} parent=1 // pred_fallthru
      _
    // Predicated region
    $region22: #{tpu_custom_call.1} parent=1 // pred_check
      _
    $region23: #{tpu_custom_call.1} parent=1 // pred_check_branch
      %847 = sbr.rel (0) target = $region25
    $region24: #{tpu_custom_call.1} parent=1 // pred_region
      _
    $region25: #{tpu_custom_call.1} parent=1 // pred_fallthru
      _
    %848 = vsyncpa [#allocation3], 1

</llo_original>
